<compile_context>
chip_gen: v7x
topology: tpu7x:2x2x1
jax: 0.10.0
libtpu: 0.0.40
codegen_flags: <defaults>
</compile_context>

<pallas_src>
import functools

import numpy as np
import jax
import jax.numpy as jnp
from jax import lax
from jax.experimental import pallas as pl
from jax.experimental.pallas import tpu as pltpu


def _round_up(x, m):
    return ((x + m - 1) // m) * m


def _lane_pad(n):
    return _round_up(max(int(n), 1), 128)


def _sublane_pad(n):
    return _round_up(max(int(n), 1), 8)


def _device_params():
    """Returns (usable VMEM bytes, MXU K alignment) for the local TPU."""
    kind = ""
    try:
        kind = jax.devices()[0].device_kind.lower()
    except Exception:
        pass
    try:
        vmem_cap = int(pltpu.get_tpu_info().vmem_capacity_bytes)
    except Exception:
        # Conservative fallback: v7x has only 64 MiB per TensorCore.
        vmem_cap = (128 << 20) if any(t in kind for t in ("v5", "v6")) else (64 << 20)
    # v6e/v7x MXUs are 256x256 tiles; v5e and older are 128x128.
    k_align = 128 if any(t in kind for t in ("v2", "v3", "v4", "v5")) else 256
    return max(vmem_cap - (8 << 20), 16 << 20), k_align


# --------------------------------------------------------------------------
# Small-vocab path: per-column one-hot MXU matmuls (table single-buffered).
# --------------------------------------------------------------------------
def _matmul_embed_kernel(n_vocab, emb_dim, feat_dim, out_pad, shared, *refs):
    if feat_dim > 0:
        idx_ref, table_hbm, dense_ref, out_ref, table_vmem = refs
    else:
        idx_ref, table_hbm, out_ref, table_vmem = refs
        dense_ref = None

    # Grid-invariant table: one HBM->VMEM copy into a single-buffered scratch
    # (no default double-buffered BlockSpec block).  Grid axis is "arbitrary",
    # so program_id(0)==0 runs exactly once even on multi-core chips.
    @pl.when(pl.program_id(0) == 0)
    def _load_table():
        pltpu.sync_copy(table_hbm, table_vmem)

    tb = idx_ref.shape[0]
    kp = table_vmem.shape[1]
    iota = lax.broadcasted_iota(jnp.int32, (tb, kp), 1)
    for v in range(n_vocab):
        # One compare + one cast per column (no multi-hot accumulation loop).
        onehot = (iota == idx_ref[:, v:v + 1]).astype(jnp.float32)
        table = table_vmem[0 if shared else v]           # [Kp, E]
        res = jnp.dot(onehot, table, preferred_element_type=jnp.float32)
        out_ref[:, v * emb_dim:(v + 1) * emb_dim] = res
    if feat_dim > 0:
        out_ref[:, n_vocab * emb_dim:n_vocab * emb_dim + feat_dim] = dense_ref[...]
    if out_pad > 0:
        out_ref[:, n_vocab * emb_dim + feat_dim:] = jnp.zeros((tb, out_pad), jnp.float32)


# --------------------------------------------------------------------------
# Large-vocab path: HBM-resident table + per-row DMA gather (scalar prefetch).
# --------------------------------------------------------------------------
def _gather_embed_kernel(n_vocab, emb_dim, feat_dim, out_pad, block_rows, *refs):
    if feat_dim > 0:
        idx_smem, table_hbm, dense_ref, out_ref, gbuf, sem = refs
    else:
        idx_smem, table_hbm, out_ref, gbuf, sem = refs
        dense_ref = None

    base = pl.program_id(0) * (block_rows * n_vocab)

    def dma_round(do_start):
        def body(r, carry):
            for v in range(n_vocab):
                row = idx_smem[base + r * n_vocab + v]
                cp = pltpu.make_async_copy(table_hbm.at[row], gbuf.at[v, r], sem)
                if do_start:
                    cp.start()
                else:
                    cp.wait()
            return carry
        lax.fori_loop(0, block_rows, body, 0)

    dma_round(True)    # issue all TB*V row gathers; they overlap each other
    dma_round(False)   # wait (descriptors mirror the starts, same sizes)

    for v in range(n_vocab):
        out_ref[:, v * emb_dim:(v + 1) * emb_dim] = gbuf[v]
    if feat_dim > 0:
        out_ref[:, n_vocab * emb_dim:n_vocab * emb_dim + feat_dim] = dense_ref[...]
    if out_pad > 0:
        out_ref[:, n_vocab * emb_dim + feat_dim:] = jnp.zeros((block_rows, out_pad),
                                                              jnp.float32)


class BasePallas:
    """JAX/Pallas port of the PyTorch `Base` module's embed_input path."""

    def __init__(self, vocab_size, non_embedded_input_dim, hidden_dim,
                 embedding_dim=None, share_embeddings=False, key=None):
        self.vocab_size = tuple(int(v) for v in vocab_size)
        self.non_embedded_input_dim = int(non_embedded_input_dim)
        self.hidden_dim = int(hidden_dim)
        self.embedding_dim = int(embedding_dim or hidden_dim)
        self.share_embeddings = bool(share_embeddings)
        self.input_dim = (self.embedding_dim * len(self.vocab_size)
                          + self.non_embedded_input_dim)

        key = key if key is not None else jax.random.PRNGKey(0)
        V = len(self.vocab_size)
        E = self.embedding_dim
        if self.share_embeddings:
            # Single table used for every categorical column (nn.Embedding ~ N(0,1)).
            self.emb = jax.random.normal(key, (self.vocab_size[0], E), jnp.float32)
        else:
            keys = jax.random.split(key, V)
            self.emb = [jax.random.normal(k, (v, E), jnp.float32)
                        for k, v in zip(keys, self.vocab_size)]

        self._vmem_cap, self._k_align = _device_params()

        max_rows = self.vocab_size[0] if self.share_embeddings else max(self.vocab_size)
        # One-hot MXU path only while each table stays within 1-2 MXU K tiles;
        # anything larger uses the HBM-resident DMA-gather path.
        self._use_matmul = max_rows <= 256

        if self._use_matmul:
            T = 1 if self.share_embeddings else V
            kp = _round_up(max_rows, self._k_align)
            tbl = np.zeros((T, kp, E), np.float32)
            if self.share_embeddings:
                tbl[0, :self.vocab_size[0], :] = np.asarray(self.emb)
            else:
                for i, v in enumerate(self.vocab_size):
                    tbl[i, :v, :] = np.asarray(self.emb[i])
            self._table = jnp.asarray(tbl)                       # [T, Kp, E]
            self._row_offsets = jnp.zeros((V,), jnp.int32)       # unused (raw idx)
        else:
            if self.share_embeddings:
                self._table = self.emb                           # [vocab0, E], HBM
                self._row_offsets = jnp.zeros((V,), jnp.int32)
            else:
                self._table = jnp.concatenate(self.emb, axis=0)  # [sum(vocab), E], HBM
                offs = np.cumsum([0] + list(self.vocab_size[:-1])).astype(np.int32)
                self._row_offsets = jnp.asarray(offs)            # [V]

    # TODO(synk): forward / forward_with_embeddings are abstract in the PyTorch
    # module (raise NotImplementedError); only embed_input has concrete semantics.

    def embed_input(self, x, batch_tile=512):
        B = int(x.shape[0])
        V = len(self.vocab_size)
        E = self.embedding_dim
        F = self.non_embedded_input_dim

        n_out = V * E + F
        n_lane = _round_up(n_out, 128)          # lane-dense kernel output width
        out_pad = n_lane - n_out

        idx = x[:, :V].astype(jnp.int32)        # categorical columns (float -> int)
        dense = x[:, V:] if F > 0 else None

        if self._use_matmul:
            out = self._embed_matmul(idx, dense, B, V, E, F, n_lane, out_pad, batch_tile)
        else:
            out = self._embed_gather(idx, dense, B, V, E, F, n_lane, out_pad, batch_tile)

        if out.shape[0] != B or out.shape[1] != n_out:
            out = out[:B, :n_out]               # drop batch + lane padding (one slice)
        return out

    # -- small-vocab path --------------------------------------------------
    def _embed_matmul(self, idx, dense, B, V, E, F, n_lane, out_pad, batch_tile):
        T, kp, _ = self._table.shape
        cap = self._vmem_cap

        def vmem_need(tb):
            tbs = _sublane_pad(tb)
            need = T * kp * _lane_pad(E) * 4                        # single table copy
            need += 2 * tbs * _lane_pad(V) * 4                      # idx blocks (x2 buf)
            need += 2 * tbs * n_lane * 4                            # out blocks (x2 buf)
            if F > 0:
                need += 2 * tbs * _lane_pad(F) * 4                  # dense blocks
            need += tbs * kp * 4 * 3 + tbs * _lane_pad(E) * 4 * 2   # iota/onehot/dot tmp
            return need + (4 << 20)

        tb = min(_round_up(B, 8), _round_up(int(batch_tile), 8))
        while tb > 8 and vmem_need(tb) > cap:
            tb = _round_up(tb // 2, 8)
        Bp = _round_up(B, tb)
        if Bp != B:
            idx = jnp.pad(idx, ((0, Bp - B), (0, 0)))    # padded rows are discarded
            if F > 0:
                dense = jnp.pad(dense, ((0, Bp - B), (0, 0)))

        kernel = functools.partial(_matmul_embed_kernel, V, E, F, out_pad,
                                   self.share_embeddings)

        in_specs = [pl.BlockSpec((tb, V), lambda i: (i, 0)),
                    pl.BlockSpec(memory_space=pl.ANY)]   # table stays in HBM
        inputs = [idx, self._table]
        if F > 0:
            in_specs.append(pl.BlockSpec((tb, F), lambda i: (i, 0)))
            inputs.append(dense)

        return pl.pallas_call(
            kernel,
            out_shape=jax.ShapeDtypeStruct((Bp, n_lane), jnp.float32),
            grid=(Bp // tb,),
            in_specs=in_specs,
            out_specs=pl.BlockSpec((tb, n_lane), lambda i: (i, 0)),
            scratch_shapes=[pltpu.VMEM((T, kp, E), jnp.float32)],
            compiler_params=pltpu.CompilerParams(
                # "arbitrary": the program_id(0)==0 table load must run exactly
                # once (megacore sharding would skip it on the second core).
                dimension_semantics=("arbitrary",),
                vmem_limit_bytes=int(min(cap, max(vmem_need(tb), 16 << 20))),
            ),
        )(*inputs)

    # -- large-vocab path ---------------------------------------------------
    def _embed_gather(self, idx, dense, B, V, E, F, n_lane, out_pad, batch_tile):
        cap = self._vmem_cap

        def vmem_need(tb):
            tbs = _sublane_pad(tb)
            need = V * tbs * _lane_pad(E) * 4        # gather scratch (single copy)
            need += 2 * tbs * n_lane * 4             # out blocks (x2 buf)
            if F > 0:
                need += 2 * tbs * _lane_pad(F) * 4
            return need + (4 << 20)

        # Cap the gather tile so the number of in-flight row DMAs stays modest.
        tb = min(_round_up(B, 8), _round_up(min(int(batch_tile), 256), 8))
        while tb > 8 and vmem_need(tb) > cap:
            tb = _round_up(tb // 2, 8)
        Bp = _round_up(B, tb)
        if Bp != B:
            idx = jnp.pad(idx, ((0, Bp - B), (0, 0)))   # pad rows gather row 0, discarded
            if F > 0:
                dense = jnp.pad(dense, ((0, Bp - B), (0, 0)))

        # Row indices into the row-concatenated table, flattened to 1-D so the
        # SMEM copy stays compact (a 2-D [Bp, V] SMEM array pads V up to 128).
        idx_flat = (idx + self._row_offsets[None, :]).reshape(-1)
        # TODO(synk): for Bp*V beyond ~256K entries the flat index array no longer
        # fits SMEM; it should then be blocked/DMA'd per batch tile instead.

        kernel = functools.partial(_gather_embed_kernel, V, E, F, out_pad, tb)

        in_specs = [pl.BlockSpec(memory_space=pl.ANY)]   # table stays in HBM
        inputs = [self._table]
        if F > 0:
            in_specs.append(pl.BlockSpec((tb, F), lambda i, idx_ref: (i, 0)))
            inputs.append(dense)

        grid_spec = pltpu.PrefetchScalarGridSpec(
            num_scalar_prefetch=1,
            grid=(Bp // tb,),
            in_specs=in_specs,
            out_specs=pl.BlockSpec((tb, n_lane), lambda i, idx_ref: (i, 0)),
            scratch_shapes=[pltpu.VMEM((V, tb, E), jnp.float32),
                            pltpu.SemaphoreType.DMA],
        )
        return pl.pallas_call(
            kernel,
            out_shape=jax.ShapeDtypeStruct((Bp, n_lane), jnp.float32),
            grid_spec=grid_spec,
            compiler_params=pltpu.CompilerParams(
                dimension_semantics=("parallel",),
                vmem_limit_bytes=int(min(cap, max(vmem_need(tb), 16 << 20))),
            ),
        )(idx_flat, *inputs)


def _embed_input_ref(model, x):
    """Pure-JAX reference mirroring the PyTorch embed_input."""
    V = len(model.vocab_size)
    idx = x[:, :V].astype(jnp.int32)
    parts = []
    for i in range(V):
        table = model.emb if model.share_embeddings else model.emb[i]
        parts.append(jnp.take(table, idx[:, i], axis=0))
    if model.non_embedded_input_dim > 0:
        parts.append(x[:, V:])
    return jnp.concatenate(parts, axis=1)


if __name__ == "__main__":
    def run_case(vocab_size, share, batch, feat_dim, hidden, seed, batch_tile):
        model = BasePallas(vocab_size, feat_dim, hidden,
                           share_embeddings=share, key=jax.random.PRNGKey(seed))
        key = jax.random.PRNGKey(0)
        ks = jax.random.split(key, len(vocab_size) + 1)
        cols = []
        for i, v in enumerate(vocab_size):
            hi = vocab_size[0] if share else v
            cols.append(jax.random.randint(ks[i], (batch, 1), 0, hi)
                        .astype(jnp.float32))
        if feat_dim > 0:
            cols.append(jax.random.normal(ks[-1], (batch, feat_dim), jnp.float32))
        x = jnp.concatenate(cols, axis=1)

        out = jax.block_until_ready(model.embed_input(x, batch_tile=batch_tile))
        ref = _embed_input_ref(model, x)
        assert out.shape == (batch, model.input_dim), (out.shape, model.input_dim)
        assert jnp.allclose(out, ref, atol=1e-5, rtol=1e-5), "mismatch vs reference"

    # Small vocab -> one-hot MXU path; non-shared tables + dense features,
    # batch tiled over a multi-step grid.
    run_case((7, 11), False, 32, 4, 32, seed=1, batch_tile=8)
    # Small vocab, shared table (not replicated), no dense features.
    run_case((13, 13, 13), True, 24, 0, 16, seed=2, batch_tile=8)
    # Large vocab -> HBM-resident DMA-gather path; non-shared + dense features.
    run_case((600, 301), False, 40, 5, 32, seed=3, batch_tile=16)
    # Large vocab, shared table, no dense features (output exactly 128 lanes).
    run_case((513, 513), True, 16, 0, 64, seed=4, batch_tile=8)

    print("KERNEL_OK")
</pallas_src>

<mosaic_0001>
module attributes {stable_mosaic.version = 11 : i64} {
  func.func @_matmul_embed_kernel(%arg0: i32, %arg1: memref<8x2xi32, #tpu.memory_space<vmem>>, %arg2: memref<2x256x32xf32, #tpu.memory_space<any>>, %arg3: memref<8x4xf32, #tpu.memory_space<vmem>>, %arg4: memref<8x128xf32, #tpu.memory_space<vmem>>, %arg5: memref<2x256x32xf32, #tpu.memory_space<vmem>>) attributes {dimension_semantics = [#tpu.dimension_semantics<arbitrary>], iteration_bounds = array<i64: 4>, scalar_prefetch = 0 : i64, scratch_operands = 1 : i64, tpu.core_type = #tpu.core_type<tc>, window_params = [{transform_indices = @transform_0, window_bounds = array<i64: 8, 2>}, {}, {transform_indices = @transform_2, window_bounds = array<i64: 8, 4>}, {transform_indices = @transform_3, window_bounds = array<i64: 8, 128>}]} {
    %c0_i32 = arith.constant 0 : i32
    %0 = arith.cmpi eq, %arg0, %c0_i32 : i32
    %1 = arith.extui %0 : i1 to i32
    %c0_i32_0 = arith.constant 0 : i32
    %2 = arith.cmpi ne, %1, %c0_i32_0 : i32
    scf.if %2 {
      "tpu.region"() ({
        %26 = tpu.sem_alloc : memref<!tpu.dma_semaphore, #tpu.memory_space<semaphore_mem>>
        tpu.enqueue_dma source(%arg2 : memref<2x256x32xf32, #tpu.memory_space<any>>) target(%arg5 : memref<2x256x32xf32, #tpu.memory_space<vmem>>) target_semaphore(%26 : memref<!tpu.dma_semaphore, #tpu.memory_space<semaphore_mem>>)
        tpu.wait_dma2 semaphore(%26 : memref<!tpu.dma_semaphore, #tpu.memory_space<semaphore_mem>>) src(%arg2 : memref<2x256x32xf32, #tpu.memory_space<any>>) dst(%arg5 : memref<2x256x32xf32, #tpu.memory_space<vmem>>)
        tpu.yield
      }) : () -> ()
    } else {
    }
    %3 = tpu.iota {dimensions = array<i32: 1>} : vector<8x256xi32>
    %c0 = arith.constant 0 : index
    %c0_1 = arith.constant 0 : index
    %4 = vector.load %arg1[%c0, %c0_1] : memref<8x2xi32, #tpu.memory_space<vmem>>, vector<8x1xi32>
    %5 = vector.broadcast %4 : vector<8x1xi32> to vector<8x256xi32>
    %6 = arith.cmpi eq, %3, %5 : vector<8x256xi32>
    %7 = arith.extui %6 : vector<8x256xi1> to vector<8x256xi32>
    %8 = arith.sitofp %7 : vector<8x256xi32> to vector<8x256xf32>
    %c0_2 = arith.constant 0 : index
    %c0_3 = arith.constant 0 : index
    %c0_4 = arith.constant 0 : index
    %9 = vector.load %arg5[%c0_2, %c0_3, %c0_4] : memref<2x256x32xf32, #tpu.memory_space<vmem>>, vector<1x256x32xf32>
    %10 = vector.shape_cast %9 : vector<1x256x32xf32> to vector<256x32xf32>
    %cst = arith.constant dense<0.000000e+00> : vector<8x32xf32>
    %11 = tpu.matmul %8, %10, %cst {dimension_numbers = #tpu.dot_dimension_numbers<[1], [0], [0], [1], [0, 0, 1, 1], [], []>} : vector<8x256xf32>, vector<256x32xf32>, vector<8x32xf32> -> vector<8x32xf32>
    %c0_5 = arith.constant 0 : index
    %c0_6 = arith.constant 0 : index
    %12 = vector.load %arg4[%c0_5, %c0_6] : memref<8x128xf32, #tpu.memory_space<vmem>>, vector<8x32xf32>
    tpu.vector_store %arg4[%c0_5, %c0_6], %11 {strides = array<i32>} : memref<8x128xf32, #tpu.memory_space<vmem>>, vector<8x32xf32>,
    %c0_7 = arith.constant 0 : index
    %c1 = arith.constant 1 : index
    %13 = vector.load %arg1[%c0_7, %c1] : memref<8x2xi32, #tpu.memory_space<vmem>>, vector<8x1xi32>
    %14 = vector.broadcast %13 : vector<8x1xi32> to vector<8x256xi32>
    %15 = arith.cmpi eq, %3, %14 : vector<8x256xi32>
    %16 = arith.extui %15 : vector<8x256xi1> to vector<8x256xi32>
    %17 = arith.sitofp %16 : vector<8x256xi32> to vector<8x256xf32>
    %c1_8 = arith.constant 1 : index
    %c0_9 = arith.constant 0 : index
    %c0_10 = arith.constant 0 : index
    %18 = vector.load %arg5[%c1_8, %c0_9, %c0_10] : memref<2x256x32xf32, #tpu.memory_space<vmem>>, vector<1x256x32xf32>
    %19 = vector.shape_cast %18 : vector<1x256x32xf32> to vector<256x32xf32>
    %cst_11 = arith.constant dense<0.000000e+00> : vector<8x32xf32>
    %20 = tpu.matmul %17, %19, %cst_11 {dimension_numbers = #tpu.dot_dimension_numbers<[1], [0], [0], [1], [0, 0, 1, 1], [], []>} : vector<8x256xf32>, vector<256x32xf32>, vector<8x32xf32> -> vector<8x32xf32>
    %c0_12 = arith.constant 0 : index
    %c32 = arith.constant 32 : index
    %21 = vector.load %arg4[%c0_12, %c32] : memref<8x128xf32, #tpu.memory_space<vmem>>, vector<8x32xf32>
    tpu.vector_store %arg4[%c0_12, %c32], %20 {strides = array<i32>} : memref<8x128xf32, #tpu.memory_space<vmem>>, vector<8x32xf32>,
    %c0_13 = arith.constant 0 : index
    %c0_14 = arith.constant 0 : index
    %22 = vector.load %arg3[%c0_13, %c0_14] : memref<8x4xf32, #tpu.memory_space<vmem>>, vector<8x4xf32>
    %c0_15 = arith.constant 0 : index
    %c64 = arith.constant 64 : index
    %23 = vector.load %arg4[%c0_15, %c64] : memref<8x128xf32, #tpu.memory_space<vmem>>, vector<8x4xf32>
    tpu.vector_store %arg4[%c0_15, %c64], %22 {strides = array<i32>} : memref<8x128xf32, #tpu.memory_space<vmem>>, vector<8x4xf32>,
    %cst_16 = arith.constant 0.000000e+00 : f32
    %24 = vector.broadcast %cst_16 : f32 to vector<8x60xf32>
    %c0_17 = arith.constant 0 : index
    %c68 = arith.constant 68 : index
    %25 = vector.load %arg4[%c0_17, %c68] : memref<8x128xf32, #tpu.memory_space<vmem>>, vector<8x60xf32>
    tpu.vector_store %arg4[%c0_17, %c68], %24 {strides = array<i32>} : memref<8x128xf32, #tpu.memory_space<vmem>>, vector<8x60xf32>,
    return
  }
  func.func @transform_0(%arg0: i32) -> (i32, i32) {
    %c0_i32 = arith.constant 0 : i32
    %c0_i32_0 = arith.constant 0 : i32
    return %arg0, %c0_i32 : i32, i32
  }
  func.func @transform_2(%arg0: i32) -> (i32, i32) {
    %c0_i32 = arith.constant 0 : i32
    %c0_i32_0 = arith.constant 0 : i32
    return %arg0, %c0_i32 : i32, i32
  }
  func.func @transform_3(%arg0: i32) -> (i32, i32) {
    %c0_i32 = arith.constant 0 : i32
    %c0_i32_0 = arith.constant 0 : i32
    return %arg0, %c0_i32 : i32, i32
  }
}

</mosaic_0001>

<llo_original>
// kernel: tpu_custom_call.1
$region0: #{tpu_custom_call.1}
  #allocation0 [shape = 'u32[]', space=smem, size = 0x4, offset = 0x4, fixed_abs, tag = 'smem constant byte address 0x4 - core index']
  #allocation1 [shape = 'u32[144,128]{1,0:T(1,128)}', space=vmem, size = 0x12000, scoped, tag = 'internal scratch']
  #allocation2 [shape = 'f32[2,256,32]{2,1,0:T(8,128)}', space=vmem, size = 0x40000, scoped, tag = 'scratch operand']
  #allocation6 [shape = 's32[]', space=sflag, size = 0x4, offset = 0, fixed_abs, tag = 'sflag constant byte address 0x0 - dummy sync flag']
  %s0 = inlined_call_operand.vmem [shape: s32[32,2], index: 0, kind: input, shape index: {}]
  %s1 = inlined_call_operand.vmem [shape: f32[2,256,32], index: 1, kind: input, shape index: {}]
  %s2 = inlined_call_operand.vmem [shape: f32[32,4], index: 2, kind: input, shape index: {}]
  %s3 = inlined_call_operand.hbm [shape: f32[32,128], index: 3, kind: output, shape index: {}]
  %s4 = sld [smem:[#allocation0]]
  $region80: #{tpu_custom_call.1} parent=0
    _
  %s6 = ssub.s32 1, %s4
  %s7 = scalar_select 0, %s6, %s4
  $region1: #{tpu_custom_call.1} parent=0
    #allocation3 [shape = 'u8[8192]{0}', space=vmem, size = 0x2000, scoped, tag = 'output window, operand 0']
    #allocation4 [shape = 's32[2]{0}', space=sflag, size = 0x8, scoped, tag = 'scoped memory for tpu_custom_call.1']
    %8 = vsyncpa [#allocation4], 0
    %s9 = scalar_lea.sflag [#allocation4], 1
    %10 = vsyncpa %s9, 0
    loop: start=0, step=1, limit=6
    $region2: #{tpu_custom_call.1} parent=1 // loop_pre_header
      _
    $region3: #{tpu_custom_call.1} parent=1 // loop_header
      %s12 = sphi 0, %s16
      %p13 = scmp.ge.s32.totalorder %s12, 6
      %s22 = sphi 0, %s24
      %s25 = sphi 0, %s22
      %s26 = sphi 0, %s25
      %s42 = sphi 0, %s26
      %s48 = sphi 0, %s50
      %s51 = sphi 0, %s48
      %s52 = sphi 0, %s51
      %s68 = sphi 0, %s52
      %s74 = sphi 0, %s76
      %s77 = sphi 0, %s74
      %s78 = sphi 0, %s77
      %s94 = sphi 0, %s78
    $region4: #{tpu_custom_call.1} parent=1 // loop_header_branch
      %15 = sbr.rel (%p13) target = $region8
    $region5: #{tpu_custom_call.1} parent=1 // loop_body
      %s17 = ssub.s32 %s12, 1
      %s18 = ssub.s32 %s12, 2
      %s19 = sadd.s32 %s12, 1
      %s20 = ssub.s32 %s12, %s19
      %p21 = scmp.eq.s32.totalorder %s20, 0
      %s23 = sadd.s32 %s22, 1
      %s24 = scalar_select %p21, %s22, %s23
      %p27 = pneg %p21
      %p28 = scmp.eq.s32.totalorder %s12, 3
      %p29 = por %p27, %p28
      %p30 = scmp.ne.s32.totalorder %s22, %s25
      %p31 = scmp.eq.s32.totalorder %s12, 0
      %p32 = por %p30, %p31
      %p33 = scmp.ne.s32.totalorder %s22, %s25
      %p34 = scmp.eq.s32.totalorder %s17, 3
      %p35 = por %p33, %p34
      %p36 = scmp.ne.s32.totalorder %s25, %s26
      %p37 = scmp.eq.s32.totalorder %s17, 0
      %p38 = por %p36, %p37
      %p39 = scmp.ne.s32.totalorder %s25, %s26
      %p40 = scmp.eq.s32.totalorder %s18, 3
      %p41 = por %p39, %p40
      %p43 = scmp.ne.s32.totalorder %s26, %s42
      %p44 = scmp.eq.s32.totalorder %s18, 0
      %p45 = por %p43, %p44
      %s46 = ssub.s32 %s12, %s19
      %p47 = scmp.eq.s32.totalorder %s46, 0
      %s49 = sadd.s32 %s48, 1
      %s50 = scalar_select %p47, %s48, %s49
      %p53 = pneg %p47
      %p54 = scmp.eq.s32.totalorder %s12, 3
      %p55 = por %p53, %p54
      %p56 = scmp.ne.s32.totalorder %s48, %s51
      %p57 = scmp.eq.s32.totalorder %s12, 0
      %p58 = por %p56, %p57
      %p59 = scmp.ne.s32.totalorder %s48, %s51
      %p60 = scmp.eq.s32.totalorder %s17, 3
      %p61 = por %p59, %p60
      %p62 = scmp.ne.s32.totalorder %s51, %s52
      %p63 = scmp.eq.s32.totalorder %s17, 0
      %p64 = por %p62, %p63
      %p65 = scmp.ne.s32.totalorder %s51, %s52
      %p66 = scmp.eq.s32.totalorder %s18, 3
      %p67 = por %p65, %p66
      %p69 = scmp.ne.s32.totalorder %s52, %s68
      %p70 = scmp.eq.s32.totalorder %s18, 0
      %p71 = por %p69, %p70
      %s72 = ssub.s32 %s12, %s19
      %p73 = scmp.eq.s32.totalorder %s72, 0
      %s75 = sadd.s32 %s74, 1
      %s76 = scalar_select %p73, %s74, %s75
      %p79 = pneg %p73
      %p80 = scmp.eq.s32.totalorder %s12, 3
      %p81 = por %p79, %p80
      %p82 = scmp.ne.s32.totalorder %s74, %s77
      %p83 = scmp.eq.s32.totalorder %s12, 0
      %p84 = por %p82, %p83
      %p85 = scmp.ne.s32.totalorder %s74, %s77
      %p86 = scmp.eq.s32.totalorder %s17, 3
      %p87 = por %p85, %p86
      %p88 = scmp.ne.s32.totalorder %s77, %s78
      %p89 = scmp.eq.s32.totalorder %s17, 0
      %p90 = por %p88, %p89
      %p91 = scmp.ne.s32.totalorder %s77, %s78
      %p92 = scmp.eq.s32.totalorder %s18, 3
      %p93 = por %p91, %p92
      %p95 = scmp.ne.s32.totalorder %s78, %s94
      %p96 = scmp.eq.s32.totalorder %s18, 0
      %p97 = por %p95, %p96
      %p98 = scmp.le.s32.totalorder 1, %s12
      %p99 = scmp.lt.s32.totalorder %s12, 5
      %p100 = pnand %p98, %p99
      %p101 = pneg %p100
      // Predicated region
      $region9: #{tpu_custom_call.1} parent=5 // pred_check
        _
      $region10: #{tpu_custom_call.1} parent=5 // pred_check_branch
        %103 = sbr.rel (%p100) target = $region12
      $region11: #{tpu_custom_call.1} parent=5 // pred_region
        %s104 = ssub.s32 %s12, 1
      $region12: #{tpu_custom_call.1} parent=5 // pred_fallthru
        _
      %p105 = scmp.lt.s32.totalorder %s12, 4
      // Predicated region
      $region13: #{tpu_custom_call.1} parent=5 // pred_check
        %p106 = pneg %p105
      $region14: #{tpu_custom_call.1} parent=5 // pred_check_branch
        %108 = sbr.rel (%p106) target = $region16
      $region15: #{tpu_custom_call.1} parent=5 // pred_region
        // Predicated region
        $region17: #{tpu_custom_call.1} parent=15 // pred_check
          %p109 = pneg %p32
        $region18: #{tpu_custom_call.1} parent=15 // pred_check_branch
          %111 = sbr.rel (%p109) target = $region20
        $region19: #{tpu_custom_call.1} parent=15 // pred_region
          %p112 = scmp.lt.s32.totalorder %s12, 3
          %s113 = scalar_select %p112, %s12, 3
          %s114 = smul.addr %s113, 8
          %s115 = scalar_lea.vmem %s0, %s114
        $region20: #{tpu_custom_call.1} parent=15 // pred_fallthru
          _
        // Predicated region
        $region21: #{tpu_custom_call.1} parent=15 // pred_check
          %p116 = pneg %p58
        $region22: #{tpu_custom_call.1} parent=15 // pred_check_branch
          %118 = sbr.rel (%p116) target = $region24
        $region23: #{tpu_custom_call.1} parent=15 // pred_region
          %p119 = scmp.lt.s32.totalorder %s12, 3
          %s120 = scalar_select %p119, %s12, 3
          %s121 = smul.addr %s120, 8
          %s122 = scalar_lea.vmem %s2, %s121
        $region24: #{tpu_custom_call.1} parent=15 // pred_fallthru
          _
      $region16: #{tpu_custom_call.1} parent=5 // pred_fallthru
        _
      %p123 = scmp.le.s32.totalorder 1, %s12
      %p124 = scmp.lt.s32.totalorder %s12, 5
      %p125 = pnand %p123, %p124
      %p126 = pneg %p125
      // Predicated region
      $region25: #{tpu_custom_call.1} parent=5 // pred_check
        _
      $region26: #{tpu_custom_call.1} parent=5 // pred_check_branch
        %128 = sbr.rel (%p125) target = $region28
      $region27: #{tpu_custom_call.1} parent=5 // pred_region
        %s129 = ssub.s32 %s12, 1
        %p130 = scmp.lt.s32.totalorder %s17, 3
        %s131 = scalar_select %p130, %s17, 3
        %s132 = smul.addr %s131, 8
        %s133 = scalar_lea.vmem %s0, %s132
        %p134 = pneg %p38
        %p135 = pneg %p35
        %p136 = scmp.lt.s32.totalorder %s17, 3
        %s137 = scalar_select %p136, %s17, 3
        %s138 = smul.addr %s137, 8
        %s139 = scalar_lea.vmem %s2, %s138
        %p140 = pneg %p64
        %p141 = pneg %p61
        %p142 = pneg %p90
        %p143 = pneg %p87
        %s144 = sand.u32 %s77, 1
        %s145 = scalar_lea.sflag [#allocation4], %s144
        %s146 = sand.u32 %s77, 1
        %s147 = smul.addr %s146, 8
        %s148 = scalar_lea.vmem [#allocation3], %s147
        %p149 = scmp.lt.s32.totalorder %s17, 3
        %s150 = scalar_select %p149, %s17, 3
        %s151 = smul.addr %s150, 8
        %s152 = scalar_lea.vmem %s0, %s151
        %p153 = scmp.lt.s32.totalorder %s17, 3
        %s154 = scalar_select %p153, %s17, 3
        %s155 = smul.addr %s154, 8
        %s156 = scalar_lea.vmem %s2, %s155
        %p157 = scmp.eq.s32.totalorder %s17, 0
        // Predicated region
        $region29: #{tpu_custom_call.1} parent=27 // pred_check
          %p158 = pneg %p157
        $region30: #{tpu_custom_call.1} parent=27 // pred_check_branch
          %160 = sbr.rel (%p158) target = $region32
        $region31: #{tpu_custom_call.1} parent=27 // pred_region
          $region33: #{tpu_custom_call.1} parent=31
            #allocation5 [shape = 's32[1]{0}', space=sflag, size = 0x4, scoped, tag = 'scoped memory for tpu_custom_call.1']
            %p162 = scmp.lt.u32.totalorder 512, 8
            %p163 = pneg %p162
            // Predicated region
            $region34: #{tpu_custom_call.1} parent=33 // pred_check
              _
            $region35: #{tpu_custom_call.1} parent=33 // pred_check_branch
              %165 = sbr.rel (%p162) target = $region37
            $region36: #{tpu_custom_call.1} parent=33 // pred_region
              %s180 = sand.u32 512, 7
              %p181 = scmp.eq.s32.totalorder %s180, 0
              // Predicated region
              $region49: #{tpu_custom_call.1} parent=36 // pred_check
                %p182 = pneg %p181
              $region50: #{tpu_custom_call.1} parent=36 // pred_check_branch
                %184 = sbr.rel (%p182) target = $region52
              $region51: #{tpu_custom_call.1} parent=36 // pred_region
                loop: start=0, step=1, limit=1
                $region53: #{tpu_custom_call.1} parent=51 // loop_pre_header
                  _
                $region54: #{tpu_custom_call.1} parent=51 // loop_header
                  %s186 = sphi 0, %s190
                  %p187 = scmp.ge.s32.totalorder %s186, 1
                  %s191 = sphi %s1, %s1
                  %s192 = sphi [#allocation2], [#allocation2]
                $region55: #{tpu_custom_call.1} parent=51 // loop_header_branch
                  %189 = sbr.rel (%p187) target = $region59
                $region56: #{tpu_custom_call.1} parent=51 // loop_body
                  %v193 = vld [vmem:[%s191] sm:$0xff]
                  %194 = vst [vmem:[%s192] sm:$0xff] %v193
                  %v195 = vld [vmem:[%s191 + $0x8] sm:$0xff]
                  %196 = vst [vmem:[%s192 + $0x8] sm:$0xff] %v195
                  %v197 = vld [vmem:[%s191 + $0x10] sm:$0xff]
                  %198 = vst [vmem:[%s192 + $0x10] sm:$0xff] %v197
                  %v199 = vld [vmem:[%s191 + $0x18] sm:$0xff]
                  %200 = vst [vmem:[%s192 + $0x18] sm:$0xff] %v199
                  %v201 = vld [vmem:[%s191 + $0x20] sm:$0xff]
                  %202 = vst [vmem:[%s192 + $0x20] sm:$0xff] %v201
                  %v203 = vld [vmem:[%s191 + $0x28] sm:$0xff]
                  %204 = vst [vmem:[%s192 + $0x28] sm:$0xff] %v203
                  %v205 = vld [vmem:[%s191 + $0x30] sm:$0xff]
                  %206 = vst [vmem:[%s192 + $0x30] sm:$0xff] %v205
                  %v207 = vld [vmem:[%s191 + $0x38] sm:$0xff]
                  %208 = vst [vmem:[%s192 + $0x38] sm:$0xff] %v207
                  %v209 = vld [vmem:[%s191 + $0x40] sm:$0xff]
                  %210 = vst [vmem:[%s192 + $0x40] sm:$0xff] %v209
                  %v211 = vld [vmem:[%s191 + $0x48] sm:$0xff]
                  %212 = vst [vmem:[%s192 + $0x48] sm:$0xff] %v211
                  %v213 = vld [vmem:[%s191 + $0x50] sm:$0xff]
                  %214 = vst [vmem:[%s192 + $0x50] sm:$0xff] %v213
                  %v215 = vld [vmem:[%s191 + $0x58] sm:$0xff]
                  %216 = vst [vmem:[%s192 + $0x58] sm:$0xff] %v215
                  %v217 = vld [vmem:[%s191 + $0x60] sm:$0xff]
                  %218 = vst [vmem:[%s192 + $0x60] sm:$0xff] %v217
                  %v219 = vld [vmem:[%s191 + $0x68] sm:$0xff]
                  %220 = vst [vmem:[%s192 + $0x68] sm:$0xff] %v219
                  %v221 = vld [vmem:[%s191 + $0x70] sm:$0xff]
                  %222 = vst [vmem:[%s192 + $0x70] sm:$0xff] %v221
                  %v223 = vld [vmem:[%s191 + $0x78] sm:$0xff]
                  %224 = vst [vmem:[%s192 + $0x78] sm:$0xff] %v223
                  %v225 = vld [vmem:[%s191 + $0x80] sm:$0xff]
                  %226 = vst [vmem:[%s192 + $0x80] sm:$0xff] %v225
                  %v227 = vld [vmem:[%s191 + $0x88] sm:$0xff]
                  %228 = vst [vmem:[%s192 + $0x88] sm:$0xff] %v227
                  %v229 = vld [vmem:[%s191 + $0x90] sm:$0xff]
                  %230 = vst [vmem:[%s192 + $0x90] sm:$0xff] %v229
                  %v231 = vld [vmem:[%s191 + $0x98] sm:$0xff]
                  %232 = vst [vmem:[%s192 + $0x98] sm:$0xff] %v231
                  %v233 = vld [vmem:[%s191 + $0xa0] sm:$0xff]
                  %234 = vst [vmem:[%s192 + $0xa0] sm:$0xff] %v233
                  %v235 = vld [vmem:[%s191 + $0xa8] sm:$0xff]
                  %236 = vst [vmem:[%s192 + $0xa8] sm:$0xff] %v235
                  %v237 = vld [vmem:[%s191 + $0xb0] sm:$0xff]
                  %238 = vst [vmem:[%s192 + $0xb0] sm:$0xff] %v237
                  %v239 = vld [vmem:[%s191 + $0xb8] sm:$0xff]
                  %240 = vst [vmem:[%s192 + $0xb8] sm:$0xff] %v239
                  %v241 = vld [vmem:[%s191 + $0xc0] sm:$0xff]
                  %242 = vst [vmem:[%s192 + $0xc0] sm:$0xff] %v241
                  %v243 = vld [vmem:[%s191 + $0xc8] sm:$0xff]
                  %244 = vst [vmem:[%s192 + $0xc8] sm:$0xff] %v243
                  %v245 = vld [vmem:[%s191 + $0xd0] sm:$0xff]
                  %246 = vst [vmem:[%s192 + $0xd0] sm:$0xff] %v245
                  %v247 = vld [vmem:[%s191 + $0xd8] sm:$0xff]
                  %248 = vst [vmem:[%s192 + $0xd8] sm:$0xff] %v247
                  %v249 = vld [vmem:[%s191 + $0xe0] sm:$0xff]
                  %250 = vst [vmem:[%s192 + $0xe0] sm:$0xff] %v249
                  %v251 = vld [vmem:[%s191 + $0xe8] sm:$0xff]
                  %252 = vst [vmem:[%s192 + $0xe8] sm:$0xff] %v251
                  %v253 = vld [vmem:[%s191 + $0xf0] sm:$0xff]
                  %254 = vst [vmem:[%s192 + $0xf0] sm:$0xff] %v253
                  %v255 = vld [vmem:[%s191 + $0xf8] sm:$0xff]
                  %256 = vst [vmem:[%s192 + $0xf8] sm:$0xff] %v255
                  %v257 = vld [vmem:[%s191 + $0x100] sm:$0xff]
                  %258 = vst [vmem:[%s192 + $0x100] sm:$0xff] %v257
                  %v259 = vld [vmem:[%s191 + $0x108] sm:$0xff]
                  %260 = vst [vmem:[%s192 + $0x108] sm:$0xff] %v259
                  %v261 = vld [vmem:[%s191 + $0x110] sm:$0xff]
                  %262 = vst [vmem:[%s192 + $0x110] sm:$0xff] %v261
                  %v263 = vld [vmem:[%s191 + $0x118] sm:$0xff]
                  %264 = vst [vmem:[%s192 + $0x118] sm:$0xff] %v263
                  %v265 = vld [vmem:[%s191 + $0x120] sm:$0xff]
                  %266 = vst [vmem:[%s192 + $0x120] sm:$0xff] %v265
                  %v267 = vld [vmem:[%s191 + $0x128] sm:$0xff]
                  %268 = vst [vmem:[%s192 + $0x128] sm:$0xff] %v267
                  %v269 = vld [vmem:[%s191 + $0x130] sm:$0xff]
                  %270 = vst [vmem:[%s192 + $0x130] sm:$0xff] %v269
                  %v271 = vld [vmem:[%s191 + $0x138] sm:$0xff]
                  %272 = vst [vmem:[%s192 + $0x138] sm:$0xff] %v271
                  %v273 = vld [vmem:[%s191 + $0x140] sm:$0xff]
                  %274 = vst [vmem:[%s192 + $0x140] sm:$0xff] %v273
                  %v275 = vld [vmem:[%s191 + $0x148] sm:$0xff]
                  %276 = vst [vmem:[%s192 + $0x148] sm:$0xff] %v275
                  %v277 = vld [vmem:[%s191 + $0x150] sm:$0xff]
                  %278 = vst [vmem:[%s192 + $0x150] sm:$0xff] %v277
                  %v279 = vld [vmem:[%s191 + $0x158] sm:$0xff]
                  %280 = vst [vmem:[%s192 + $0x158] sm:$0xff] %v279
                  %v281 = vld [vmem:[%s191 + $0x160] sm:$0xff]
                  %282 = vst [vmem:[%s192 + $0x160] sm:$0xff] %v281
                  %v283 = vld [vmem:[%s191 + $0x168] sm:$0xff]
                  %284 = vst [vmem:[%s192 + $0x168] sm:$0xff] %v283
                  %v285 = vld [vmem:[%s191 + $0x170] sm:$0xff]
                  %286 = vst [vmem:[%s192 + $0x170] sm:$0xff] %v285
                  %v287 = vld [vmem:[%s191 + $0x178] sm:$0xff]
                  %288 = vst [vmem:[%s192 + $0x178] sm:$0xff] %v287
                  %v289 = vld [vmem:[%s191 + $0x180] sm:$0xff]
                  %290 = vst [vmem:[%s192 + $0x180] sm:$0xff] %v289
                  %v291 = vld [vmem:[%s191 + $0x188] sm:$0xff]
                  %292 = vst [vmem:[%s192 + $0x188] sm:$0xff] %v291
                  %v293 = vld [vmem:[%s191 + $0x190] sm:$0xff]
                  %294 = vst [vmem:[%s192 + $0x190] sm:$0xff] %v293
                  %v295 = vld [vmem:[%s191 + $0x198] sm:$0xff]
                  %296 = vst [vmem:[%s192 + $0x198] sm:$0xff] %v295
                  %v297 = vld [vmem:[%s191 + $0x1a0] sm:$0xff]
                  %298 = vst [vmem:[%s192 + $0x1a0] sm:$0xff] %v297
                  %v299 = vld [vmem:[%s191 + $0x1a8] sm:$0xff]
                  %300 = vst [vmem:[%s192 + $0x1a8] sm:$0xff] %v299
                  %v301 = vld [vmem:[%s191 + $0x1b0] sm:$0xff]
                  %302 = vst [vmem:[%s192 + $0x1b0] sm:$0xff] %v301
                  %v303 = vld [vmem:[%s191 + $0x1b8] sm:$0xff]
                  %304 = vst [vmem:[%s192 + $0x1b8] sm:$0xff] %v303
                  %v305 = vld [vmem:[%s191 + $0x1c0] sm:$0xff]
                  %306 = vst [vmem:[%s192 + $0x1c0] sm:$0xff] %v305
                  %v307 = vld [vmem:[%s191 + $0x1c8] sm:$0xff]
                  %308 = vst [vmem:[%s192 + $0x1c8] sm:$0xff] %v307
                  %v309 = vld [vmem:[%s191 + $0x1d0] sm:$0xff]
                  %310 = vst [vmem:[%s192 + $0x1d0] sm:$0xff] %v309
                  %v311 = vld [vmem:[%s191 + $0x1d8] sm:$0xff]
                  %312 = vst [vmem:[%s192 + $0x1d8] sm:$0xff] %v311
                  %v313 = vld [vmem:[%s191 + $0x1e0] sm:$0xff]
                  %314 = vst [vmem:[%s192 + $0x1e0] sm:$0xff] %v313
                  %v315 = vld [vmem:[%s191 + $0x1e8] sm:$0xff]
                  %316 = vst [vmem:[%s192 + $0x1e8] sm:$0xff] %v315
                  %v317 = vld [vmem:[%s191 + $0x1f0] sm:$0xff]
                  %318 = vst [vmem:[%s192 + $0x1f0] sm:$0xff] %v317
                  %v319 = vld [vmem:[%s191 + $0x1f8] sm:$0xff]
                  %320 = vst [vmem:[%s192 + $0x1f8] sm:$0xff] %v319
                $region57: #{tpu_custom_call.1} parent=51 // loop_footer
                  %s190 = sadd.s32 1, %s186
                $region58: #{tpu_custom_call.1} parent=51 // loop_footer_branch
                  %185 = sbr.rel target = $region54
                $region59: #{tpu_custom_call.1} parent=51 // loop_exit
                  _
              $region52: #{tpu_custom_call.1} parent=36 // pred_fallthru
                _
              %p321 = pneg %p181
              // Predicated region
              $region60: #{tpu_custom_call.1} parent=36 // pred_check
                _
              $region61: #{tpu_custom_call.1} parent=36 // pred_check_branch
                %323 = sbr.rel (%p181) target = $region63
              $region62: #{tpu_custom_call.1} parent=36 // pred_region
                %s324 = sand.u32 512, 7
              $region63: #{tpu_custom_call.1} parent=36 // pred_fallthru
                _
            $region37: #{tpu_custom_call.1} parent=33 // pred_fallthru
              _
            // Predicated region
            $region38: #{tpu_custom_call.1} parent=33 // pred_check
              %p166 = pneg %p162
            $region39: #{tpu_custom_call.1} parent=33 // pred_check_branch
              %168 = sbr.rel (%p166) target = $region41
            $region40: #{tpu_custom_call.1} parent=33 // pred_region
              %s169 = sshllo.u32 0, 512
              loop: start=0, step=1, limit=1
              $region42: #{tpu_custom_call.1} parent=40 // loop_pre_header
                _
              $region43: #{tpu_custom_call.1} parent=40 // loop_header
                %s171 = sphi 0, %s175
                %p172 = scmp.ge.s32.totalorder %s171, 1
                %s176 = sphi %s1, %s1
                %s177 = sphi [#allocation2], [#allocation2]
              $region44: #{tpu_custom_call.1} parent=40 // loop_header_branch
                %174 = sbr.rel (%p172) target = $region48
              $region45: #{tpu_custom_call.1} parent=40 // loop_body
                %v178 = vld [vmem:[%s176] sm:%s169]
                %179 = vst [vmem:[%s177] sm:%s169] %v178
              $region46: #{tpu_custom_call.1} parent=40 // loop_footer
                %s175 = sadd.s32 1, %s171
              $region47: #{tpu_custom_call.1} parent=40 // loop_footer_branch
                %170 = sbr.rel target = $region43
              $region48: #{tpu_custom_call.1} parent=40 // loop_exit
                _
            $region41: #{tpu_custom_call.1} parent=33 // pred_fallthru
              _
            // Predicated region
            $region64: #{tpu_custom_call.1} parent=33 // pred_check
              _
            $region65: #{tpu_custom_call.1} parent=33 // pred_check_branch
              %327 = sbr.rel (0) target = $region67
            $region66: #{tpu_custom_call.1} parent=33 // pred_region
              %328 = vsyncadd [#allocation5], 8192
            $region67: #{tpu_custom_call.1} parent=33 // pred_fallthru
              _
            %s329 = smul.u32 2, 256
            %s330 = smul.u32 %s329, 1
            %s331 = sshll.u32 %s330, 4
            %332 = dma.done [#allocation5], %s331
        $region32: #{tpu_custom_call.1} parent=27 // pred_fallthru
          _
        %v333 = vlaneseq
        %v334 = vand.u32 %v333, 127
        %v335 = vadd.s32 %v334, 128
        %v336 = vld [vmem:[%s152] sm:$0xff]
        %337 = vset.pattern.permute.xlu0 0
        %338 = vperm.xlu0 %337, %v336
        %v339 = vpop.permute.xlu0 %338
        %vm340 = vcmp.eq.s32.totalorder %v334, %v339
        %vm341 = vcmp.eq.s32.totalorder %v335, %v339
        %v342 = vsel %vm340, 1, 0
        %v343 = vsel %vm341, 1, 0
        %v344 = vcvt.s32.f32 %v342
        %v345 = vcvt.s32.f32 %v343
        %v346 = vld [vmem:[#allocation2] sm:$0xff]
        %v347 = vld [vmem:[#allocation2 + $0x8] sm:$0xff]
        %v348 = vld [vmem:[#allocation2 + $0x10] sm:$0xff]
        %v349 = vld [vmem:[#allocation2 + $0x18] sm:$0xff]
        %v350 = vld [vmem:[#allocation2 + $0x20] sm:$0xff]
        %v351 = vld [vmem:[#allocation2 + $0x28] sm:$0xff]
        %v352 = vld [vmem:[#allocation2 + $0x30] sm:$0xff]
        %v353 = vld [vmem:[#allocation2 + $0x38] sm:$0xff]
        %v354 = vld [vmem:[#allocation2 + $0x40] sm:$0xff]
        %v355 = vld [vmem:[#allocation2 + $0x48] sm:$0xff]
        %v356 = vld [vmem:[#allocation2 + $0x50] sm:$0xff]
        %v357 = vld [vmem:[#allocation2 + $0x58] sm:$0xff]
        %v358 = vld [vmem:[#allocation2 + $0x60] sm:$0xff]
        %v359 = vld [vmem:[#allocation2 + $0x68] sm:$0xff]
        %v360 = vld [vmem:[#allocation2 + $0x70] sm:$0xff]
        %v361 = vld [vmem:[#allocation2 + $0x78] sm:$0xff]
        %v362 = vld [vmem:[#allocation2 + $0x80] sm:$0xff]
        %v363 = vld [vmem:[#allocation2 + $0x88] sm:$0xff]
        %v364 = vld [vmem:[#allocation2 + $0x90] sm:$0xff]
        %v365 = vld [vmem:[#allocation2 + $0x98] sm:$0xff]
        %v366 = vld [vmem:[#allocation2 + $0xa0] sm:$0xff]
        %v367 = vld [vmem:[#allocation2 + $0xa8] sm:$0xff]
        %v368 = vld [vmem:[#allocation2 + $0xb0] sm:$0xff]
        %v369 = vld [vmem:[#allocation2 + $0xb8] sm:$0xff]
        %v370 = vld [vmem:[#allocation2 + $0xc0] sm:$0xff]
        %v371 = vld [vmem:[#allocation2 + $0xc8] sm:$0xff]
        %v372 = vld [vmem:[#allocation2 + $0xd0] sm:$0xff]
        %v373 = vld [vmem:[#allocation2 + $0xd8] sm:$0xff]
        %v374 = vld [vmem:[#allocation2 + $0xe0] sm:$0xff]
        %v375 = vld [vmem:[#allocation2 + $0xe8] sm:$0xff]
        %v376 = vld [vmem:[#allocation2 + $0xf0] sm:$0xff]
        %v377 = vld [vmem:[#allocation2 + $0xf8] sm:$0xff]
        %378 = vmatprep.subr.mxu0 0.0
        %379 = vmatpush1.msra.mxu0 %v346
        %380 = vmatprep.subr.mxu0 0.0
        %381 = vmatpush1.msra.mxu0 %v347
        %382 = vmatprep.subr.mxu0 0.0
        %383 = vmatpush1.msra.mxu0 %v348
        %384 = vmatprep.subr.mxu0 0.0
        %385 = vmatpush1.msra.mxu0 %v349
        %386 = vmatprep.subr.mxu0 0.0
        %387 = vmatpush1.msra.mxu0 %v350
        %388 = vmatprep.subr.mxu0 0.0
        %389 = vmatpush1.msra.mxu0 %v351
        %390 = vmatprep.subr.mxu0 0.0
        %391 = vmatpush1.msra.mxu0 %v352
        %392 = vmatprep.subr.mxu0 0.0
        %393 = vmatpush1.msra.mxu0 %v353
        %394 = vmatprep.subr.mxu0 0.0
        %395 = vmatpush1.msra.mxu0 %v354
        %396 = vmatprep.subr.mxu0 0.0
        %397 = vmatpush1.msra.mxu0 %v355
        %398 = vmatprep.subr.mxu0 0.0
        %399 = vmatpush1.msra.mxu0 %v356
        %400 = vmatprep.subr.mxu0 0.0
        %401 = vmatpush1.msra.mxu0 %v357
        %402 = vmatprep.subr.mxu0 0.0
        %403 = vmatpush1.msra.mxu0 %v358
        %404 = vmatprep.subr.mxu0 0.0
        %405 = vmatpush1.msra.mxu0 %v359
        %406 = vmatprep.subr.mxu0 0.0
        %407 = vmatpush1.msra.mxu0 %v360
        %408 = vmatprep.subr.mxu0 0.0
        %409 = vmatpush1.msra.mxu0 %v361
        %410 = vmatprep.subr.mxu0 0.0
        %411 = vmatpush1.msra.mxu0 %v362
        %412 = vmatprep.subr.mxu0 0.0
        %413 = vmatpush1.msra.mxu0 %v363
        %414 = vmatprep.subr.mxu0 0.0
        %415 = vmatpush1.msra.mxu0 %v364
        %416 = vmatprep.subr.mxu0 0.0
        %417 = vmatpush1.msra.mxu0 %v365
        %418 = vmatprep.subr.mxu0 0.0
        %419 = vmatpush1.msra.mxu0 %v366
        %420 = vmatprep.subr.mxu0 0.0
        %421 = vmatpush1.msra.mxu0 %v367
        %422 = vmatprep.subr.mxu0 0.0
        %423 = vmatpush1.msra.mxu0 %v368
        %424 = vmatprep.subr.mxu0 0.0
        %425 = vmatpush1.msra.mxu0 %v369
        %426 = vmatprep.subr.mxu0 0.0
        %427 = vmatpush1.msra.mxu0 %v370
        %428 = vmatprep.subr.mxu0 0.0
        %429 = vmatpush1.msra.mxu0 %v371
        %430 = vmatprep.subr.mxu0 0.0
        %431 = vmatpush1.msra.mxu0 %v372
        %432 = vmatprep.subr.mxu0 0.0
        %433 = vmatpush1.msra.mxu0 %v373
        %434 = vmatprep.subr.mxu0 0.0
        %435 = vmatpush1.msra.mxu0 %v374
        %436 = vmatprep.subr.mxu0 0.0
        %437 = vmatpush1.msra.mxu0 %v375
        %438 = vmatprep.subr.mxu0 0.0
        %439 = vmatpush1.msra.mxu0 %v376
        %440 = vmatprep.subr.mxu0 0.0
        %441 = vmatpush1.msra.mxu0 %v377
        %442 = vmatprep.mubr.f32.mxu0 %v345
        %443 = vmatmul.mubr.f32.gmra.mrb[0].mxu0 %v344
        %v444 = vpop.f32.mrb[0].mxu0
        %v445 = vadd.f32 0.0, %v444
        %v446 = vpop.f32.mrb[0].mxu0
        %447 = vdwg.mxu0
        %vm448 = vcmask 261120
        %449 = vst.msk [vmem:[%s148] sm:$0xff] %vm448, %v445
        %v450 = vld [vmem:[%s152] sm:$0xff]
        %451 = vset.pattern.permute.xlu0 1
        %452 = vperm.xlu0 %451, %v450
        %v453 = vpop.permute.xlu0 %452
        %vm454 = vcmp.eq.s32.totalorder %v334, %v453
        %vm455 = vcmp.eq.s32.totalorder %v335, %v453
        %v456 = vsel %vm454, 1, 0
        %v457 = vsel %vm455, 1, 0
        %v458 = vcvt.s32.f32 %v456
        %v459 = vcvt.s32.f32 %v457
        %s460 = scalar_lea.vmem [#allocation2], 256
        %v461 = vld [vmem:[%s460] sm:$0xff]
        %v462 = vld [vmem:[%s460 + $0x8] sm:$0xff]
        %v463 = vld [vmem:[%s460 + $0x10] sm:$0xff]
        %v464 = vld [vmem:[%s460 + $0x18] sm:$0xff]
        %v465 = vld [vmem:[%s460 + $0x20] sm:$0xff]
        %v466 = vld [vmem:[%s460 + $0x28] sm:$0xff]
        %v467 = vld [vmem:[%s460 + $0x30] sm:$0xff]
        %v468 = vld [vmem:[%s460 + $0x38] sm:$0xff]
        %v469 = vld [vmem:[%s460 + $0x40] sm:$0xff]
        %v470 = vld [vmem:[%s460 + $0x48] sm:$0xff]
        %v471 = vld [vmem:[%s460 + $0x50] sm:$0xff]
        %v472 = vld [vmem:[%s460 + $0x58] sm:$0xff]
        %v473 = vld [vmem:[%s460 + $0x60] sm:$0xff]
        %v474 = vld [vmem:[%s460 + $0x68] sm:$0xff]
        %v475 = vld [vmem:[%s460 + $0x70] sm:$0xff]
        %v476 = vld [vmem:[%s460 + $0x78] sm:$0xff]
        %v477 = vld [vmem:[%s460 + $0x80] sm:$0xff]
        %v478 = vld [vmem:[%s460 + $0x88] sm:$0xff]
        %v479 = vld [vmem:[%s460 + $0x90] sm:$0xff]
        %v480 = vld [vmem:[%s460 + $0x98] sm:$0xff]
        %v481 = vld [vmem:[%s460 + $0xa0] sm:$0xff]
        %v482 = vld [vmem:[%s460 + $0xa8] sm:$0xff]
        %v483 = vld [vmem:[%s460 + $0xb0] sm:$0xff]
        %v484 = vld [vmem:[%s460 + $0xb8] sm:$0xff]
        %v485 = vld [vmem:[%s460 + $0xc0] sm:$0xff]
        %v486 = vld [vmem:[%s460 + $0xc8] sm:$0xff]
        %v487 = vld [vmem:[%s460 + $0xd0] sm:$0xff]
        %v488 = vld [vmem:[%s460 + $0xd8] sm:$0xff]
        %v489 = vld [vmem:[%s460 + $0xe0] sm:$0xff]
        %v490 = vld [vmem:[%s460 + $0xe8] sm:$0xff]
        %v491 = vld [vmem:[%s460 + $0xf0] sm:$0xff]
        %v492 = vld [vmem:[%s460 + $0xf8] sm:$0xff]
        %493 = vmatprep.subr.mxu0 0.0
        %494 = vmatpush1.msra.mxu0 %v461
        %495 = vmatprep.subr.mxu0 0.0
        %496 = vmatpush1.msra.mxu0 %v462
        %497 = vmatprep.subr.mxu0 0.0
        %498 = vmatpush1.msra.mxu0 %v463
        %499 = vmatprep.subr.mxu0 0.0
        %500 = vmatpush1.msra.mxu0 %v464
        %501 = vmatprep.subr.mxu0 0.0
        %502 = vmatpush1.msra.mxu0 %v465
        %503 = vmatprep.subr.mxu0 0.0
        %504 = vmatpush1.msra.mxu0 %v466
        %505 = vmatprep.subr.mxu0 0.0
        %506 = vmatpush1.msra.mxu0 %v467
        %507 = vmatprep.subr.mxu0 0.0
        %508 = vmatpush1.msra.mxu0 %v468
        %509 = vmatprep.subr.mxu0 0.0
        %510 = vmatpush1.msra.mxu0 %v469
        %511 = vmatprep.subr.mxu0 0.0
        %512 = vmatpush1.msra.mxu0 %v470
        %513 = vmatprep.subr.mxu0 0.0
        %514 = vmatpush1.msra.mxu0 %v471
        %515 = vmatprep.subr.mxu0 0.0
        %516 = vmatpush1.msra.mxu0 %v472
        %517 = vmatprep.subr.mxu0 0.0
        %518 = vmatpush1.msra.mxu0 %v473
        %519 = vmatprep.subr.mxu0 0.0
        %520 = vmatpush1.msra.mxu0 %v474
        %521 = vmatprep.subr.mxu0 0.0
        %522 = vmatpush1.msra.mxu0 %v475
        %523 = vmatprep.subr.mxu0 0.0
        %524 = vmatpush1.msra.mxu0 %v476
        %525 = vmatprep.subr.mxu0 0.0
        %526 = vmatpush1.msra.mxu0 %v477
        %527 = vmatprep.subr.mxu0 0.0
        %528 = vmatpush1.msra.mxu0 %v478
        %529 = vmatprep.subr.mxu0 0.0
        %530 = vmatpush1.msra.mxu0 %v479
        %531 = vmatprep.subr.mxu0 0.0
        %532 = vmatpush1.msra.mxu0 %v480
        %533 = vmatprep.subr.mxu0 0.0
        %534 = vmatpush1.msra.mxu0 %v481
        %535 = vmatprep.subr.mxu0 0.0
        %536 = vmatpush1.msra.mxu0 %v482
        %537 = vmatprep.subr.mxu0 0.0
        %538 = vmatpush1.msra.mxu0 %v483
        %539 = vmatprep.subr.mxu0 0.0
        %540 = vmatpush1.msra.mxu0 %v484
        %541 = vmatprep.subr.mxu0 0.0
        %542 = vmatpush1.msra.mxu0 %v485
        %543 = vmatprep.subr.mxu0 0.0
        %544 = vmatpush1.msra.mxu0 %v486
        %545 = vmatprep.subr.mxu0 0.0
        %546 = vmatpush1.msra.mxu0 %v487
        %547 = vmatprep.subr.mxu0 0.0
        %548 = vmatpush1.msra.mxu0 %v488
        %549 = vmatprep.subr.mxu0 0.0
        %550 = vmatpush1.msra.mxu0 %v489
        %551 = vmatprep.subr.mxu0 0.0
        %552 = vmatpush1.msra.mxu0 %v490
        %553 = vmatprep.subr.mxu0 0.0
        %554 = vmatpush1.msra.mxu0 %v491
        %555 = vmatprep.subr.mxu0 0.0
        %556 = vmatpush1.msra.mxu0 %v492
        %557 = vmatprep.mubr.f32.mxu0 %v459
        %558 = vmatmul.mubr.f32.gmra.mrb[0].mxu0 %v458
        %v559 = vpop.f32.mrb[0].mxu0
        %v560 = vadd.f32 0.0, %v559
        %v561 = vpop.f32.mrb[0].mxu0
        %562 = vdwg.mxu0
        %564 = vrot.lane.b32.xlu0 %v560, 32
        %v565 = vpop.permute.xlu0 %564
        %vm567 = vcmask 523520
        %568 = vst.msk [vmem:[%s148] sm:$0xff] %vm567, %v565
        %v569 = vld [vmem:[%s156] sm:$0xff]
        %571 = vrot.lane.b32.xlu0 %v569, 64
        %v572 = vpop.permute.xlu0 %571
        %vm574 = vcmask 556544
        %575 = vst.msk [vmem:[%s148] sm:$0xff] %vm574, %v572
        %vm576 = vcmask 1048096
        %577 = vst.msk [vmem:[%s148] sm:$0xff] %vm576, 0.0
        %s578 = sand.u32 %s77, 1
        %s579 = scalar_lea.sflag [#allocation4], %s578
        %s580 = sand.u32 %s77, 1
        %s581 = smul.addr %s580, 8
        %s582 = scalar_lea.vmem [#allocation3], %s581
        // Predicated region
        $region68: #{tpu_custom_call.1} parent=27 // pred_check
          %p583 = pneg %p87
        $region69: #{tpu_custom_call.1} parent=27 // pred_check_branch
          %585 = sbr.rel (%p583) target = $region71
        $region70: #{tpu_custom_call.1} parent=27 // pred_region
          %s587 = ssub.s32 128, 128
          %588 = vsyncadd %s579, %s587
          %s589 = smul.addr %s17, 128
          %s590 = scalar_lea.hbm %s3, %s589
          %s592 = sshll.u32 %s582, 4
          %s593 = int_to_ptr.vmem [resolvable:$true] %s592
          %595 = dma.vmem_to_hbm [thread:$0]  %s593, 128, %s590, %s579
        $region71: #{tpu_custom_call.1} parent=27 // pred_fallthru
          _
      $region28: #{tpu_custom_call.1} parent=5 // pred_fallthru
        _
      %p596 = scmp.le.s32.totalorder 2, %s12
      // Predicated region
      $region72: #{tpu_custom_call.1} parent=5 // pred_check
        %p597 = pneg %p596
      $region73: #{tpu_custom_call.1} parent=5 // pred_check_branch
        %599 = sbr.rel (%p597) target = $region75
      $region74: #{tpu_custom_call.1} parent=5 // pred_region
        %s600 = ssub.s32 %s12, 2
        // Predicated region
        $region76: #{tpu_custom_call.1} parent=74 // pred_check
          %p601 = pneg %p93
        $region77: #{tpu_custom_call.1} parent=74 // pred_check_branch
          %603 = sbr.rel (%p601) target = $region79
        $region78: #{tpu_custom_call.1} parent=74 // pred_region
          %s604 = sand.u32 %s78, 1
          %s605 = scalar_lea.sflag [#allocation4], %s604
          %s606 = sand.u32 %s78, 1
          %s607 = smul.addr %s606, 8
          %s608 = scalar_lea.vmem [#allocation3], %s607
          %609 = dma.done %s605, 128
        $region79: #{tpu_custom_call.1} parent=74 // pred_fallthru
          _
      $region75: #{tpu_custom_call.1} parent=5 // pred_fallthru
        _
    $region6: #{tpu_custom_call.1} parent=1 // loop_footer
      %s16 = sadd.s32 1, %s12
    $region7: #{tpu_custom_call.1} parent=1 // loop_footer_branch
      %11 = sbr.rel target = $region3
    $region8: #{tpu_custom_call.1} parent=1 // loop_exit
      _
    %610 = vsyncpa [#allocation4], 1
    %s611 = scalar_lea.sflag [#allocation4], 1
    %612 = vsyncpa %s611, 1

</llo_original>
